<compile_context>
chip_gen: v6e
topology: v6e:2x2x1
jax: 0.10.0
libtpu: 0.0.40
codegen_flags: <defaults>
</compile_context>

<pallas_src>
import jax
import jax.numpy as jnp
from jax.experimental import pallas as pl
from jax.experimental.pallas import tpu as pltpu

_LANE = 128               # vreg lane width -> unmasked stores
_MAX_TILE_ROWS = 8192     # (8192, 128) f32 = 4 MiB per block (2x buffered = 8 MiB)


def _rand_kernel(seed_ref, out_ref):
    # seed_ref : SMEM, shape (1,), int32
    # out_ref  : VMEM block, shape (tile_rows, 128), float32
    tr, tc = out_ref.shape
    g = pl.program_id(0)

    # Global flat element index of every lane in this block.
    row0 = g * tr
    rows = jax.lax.broadcasted_iota(jnp.int32, (tr, tc), 0)
    cols = jax.lax.broadcasted_iota(jnp.int32, (tr, tc), 1)
    idx = ((row0 + rows) * tc + cols).astype(jnp.uint32)

    # Mix in the seed (golden-ratio multiply), then murmur3 fmix32 finalizer.
    seed = seed_ref[0].astype(jnp.uint32)
    x = idx + seed * jnp.uint32(0x9E3779B9)
    x = x ^ (x >> 16)
    x = x * jnp.uint32(0x85EBCA6B)
    x = x ^ (x >> 13)
    x = x * jnp.uint32(0xC2B2AE35)
    x = x ^ (x >> 16)

    # Top 24 bits -> uniform [0, 1) float32 (exact: 2^24 fits the f32 mantissa).
    u24 = (x >> 8).astype(jnp.int32)
    out_ref[...] = u24.astype(jnp.float32) * jnp.float32(1.0 / (1 << 24))


def random_guess_segmentation(x: jax.Array, seed: int = 0) -> jax.Array:
    """Pallas equivalent of RandomGuessModel(task='segmentation').forward(x).

    Args:
      x: NCHW input; only its shape (N, C, H, W) is used.
      seed: deterministic PRNG seed.
    Returns:
      float32 array of shape (N, 1, H, W) with uniform [0, 1) values.
    """
    N, _, H, W = x.shape
    total = N * H * W

    rows = pl.cdiv(total, _LANE)
    tile_rows = rows if rows <= _MAX_TILE_ROWS else _MAX_TILE_ROWS
    grid = (pl.cdiv(rows, tile_rows),)

    seed_arr = jnp.asarray([seed], dtype=jnp.int32)

    flat = pl.pallas_call(
        _rand_kernel,
        out_shape=jax.ShapeDtypeStruct((rows, _LANE), jnp.float32),
        grid=grid,
        in_specs=[
            pl.BlockSpec(memory_space=pltpu.MemorySpace.SMEM),  # seed scalar
        ],
        out_specs=pl.BlockSpec((tile_rows, _LANE), lambda g: (g, 0)),
        compiler_params=pltpu.CompilerParams(
            dimension_semantics=("parallel",),  # stateless per-tile streams
        ),
    )(seed_arr)

    flat = flat.reshape(-1)
    if rows * _LANE != total:       # drop lane padding if total % 128 != 0
        flat = flat[:total]
    return flat.reshape(N, 1, H, W)


# TODO(synk): the 'classification' branch (torch.tensor([random.choice([0, 1])]))
# is a host-side Python random scalar; it is not implemented as a TPU kernel here.


if __name__ == "__main__":
    key = jax.random.PRNGKey(0)
    # Small shapes consistent with the module: batch=2, input_channels=3, 16x16 spatial.
    x = jax.random.normal(key, (2, 3, 16, 16), dtype=jnp.float32)

    y = random_guess_segmentation(x, seed=0)
    y = jax.block_until_ready(y)

    assert y.shape == (2, 1, 16, 16), y.shape
    assert y.dtype == jnp.float32, y.dtype
    assert bool(jnp.all(y >= 0.0)) and bool(jnp.all(y < 1.0)), "values not in [0,1)"
    assert float(jnp.std(y)) > 0.1, "values look degenerate (not uniform random)"

    print("KERNEL_OK")
</pallas_src>

<mosaic_0001>
module attributes {stable_mosaic.version = 11 : i64} {
  func.func @_rand_kernel(%arg0: i32, %arg1: memref<1xi32, #tpu.memory_space<smem>>, %arg2: memref<4x128xf32, #tpu.memory_space<vmem>>) attributes {dimension_semantics = [#tpu.dimension_semantics<parallel>], iteration_bounds = array<i64: 1>, scalar_prefetch = 0 : i64, scratch_operands = 0 : i64, tpu.core_type = #tpu.core_type<tc>, window_params = [{transform_indices = @transform_0, window_bounds = array<i64: 1>}, {transform_indices = @transform_1, window_bounds = array<i64: 4, 128>}]} {
    %c4_i32 = arith.constant 4 : i32
    %0 = arith.muli %arg0, %c4_i32 : i32
    %1 = tpu.iota {dimensions = array<i32: 0>} : vector<4x128xi32>
    %2 = tpu.iota {dimensions = array<i32: 1>} : vector<4x128xi32>
    %3 = vector.broadcast %0 : i32 to vector<4x128xi32>
    %4 = arith.addi %3, %1 : vector<4x128xi32>
    %c128_i32 = arith.constant 128 : i32
    %5 = vector.broadcast %c128_i32 : i32 to vector<4x128xi32>
    %6 = arith.muli %4, %5 : vector<4x128xi32>
    %7 = arith.addi %6, %2 : vector<4x128xi32>
    %c0 = arith.constant 0 : index
    %8 = memref.load %arg1[%c0] : memref<1xi32, #tpu.memory_space<smem>>
    %c-1640531527_i32 = arith.constant -1640531527 : i32
    %9 = arith.muli %8, %c-1640531527_i32 : i32
    %10 = vector.broadcast %9 : i32 to vector<4x128xi32>
    %11 = arith.addi %7, %10 : vector<4x128xi32>
    %c16_i32 = arith.constant 16 : i32
    %12 = vector.broadcast %c16_i32 : i32 to vector<4x128xi32>
    %13 = arith.shrui %11, %12 : vector<4x128xi32>
    %14 = arith.xori %11, %13 : vector<4x128xi32>
    %c-2048144789_i32 = arith.constant -2048144789 : i32
    %15 = vector.broadcast %c-2048144789_i32 : i32 to vector<4x128xi32>
    %16 = arith.muli %14, %15 : vector<4x128xi32>
    %c13_i32 = arith.constant 13 : i32
    %17 = vector.broadcast %c13_i32 : i32 to vector<4x128xi32>
    %18 = arith.shrui %16, %17 : vector<4x128xi32>
    %19 = arith.xori %16, %18 : vector<4x128xi32>
    %c-1028477387_i32 = arith.constant -1028477387 : i32
    %20 = vector.broadcast %c-1028477387_i32 : i32 to vector<4x128xi32>
    %21 = arith.muli %19, %20 : vector<4x128xi32>
    %c16_i32_0 = arith.constant 16 : i32
    %22 = vector.broadcast %c16_i32_0 : i32 to vector<4x128xi32>
    %23 = arith.shrui %21, %22 : vector<4x128xi32>
    %24 = arith.xori %21, %23 : vector<4x128xi32>
    %c8_i32 = arith.constant 8 : i32
    %25 = vector.broadcast %c8_i32 : i32 to vector<4x128xi32>
    %26 = arith.shrui %24, %25 : vector<4x128xi32>
    %27 = arith.sitofp %26 : vector<4x128xi32> to vector<4x128xf32>
    %cst = arith.constant 5.96046448E-8 : f32
    %28 = vector.broadcast %cst : f32 to vector<4x128xf32>
    %29 = arith.mulf %27, %28 : vector<4x128xf32>
    %c0_1 = arith.constant 0 : index
    %c0_2 = arith.constant 0 : index
    %30 = vector.load %arg2[%c0_1, %c0_2] : memref<4x128xf32, #tpu.memory_space<vmem>>, vector<4x128xf32>
    tpu.vector_store %arg2[%c0_1, %c0_2], %29 {strides = array<i32>} : memref<4x128xf32, #tpu.memory_space<vmem>>, vector<4x128xf32>,
    return
  }
  func.func @transform_0(%arg0: i32) -> i32 {
    %c0_i32 = arith.constant 0 : i32
    %c0_i32_0 = arith.constant 0 : i32
    return %c0_i32 : i32
  }
  func.func @transform_1(%arg0: i32) -> (i32, i32) {
    %c0_i32 = arith.constant 0 : i32
    %c0_i32_0 = arith.constant 0 : i32
    return %arg0, %c0_i32 : i32, i32
  }
}

</mosaic_0001>

<llo_original>
// kernel: tpu_custom_call.1
$region0: #{tpu_custom_call.1}
  #allocation0 [shape = 'u32[]', space=smem, size = 0x4, offset = 0x4, fixed_abs, tag = 'smem constant byte address 0x4 - core index']
  #allocation1 [shape = 'u32[144,128]{1,0:T(1,128)}', space=vmem, size = 0x12000, scoped, tag = 'internal scratch']
  #allocation2 [shape = 's32[1]{0:T(128)S(6)}', space=smem, size = 0x200, scoped, tag = 'scoped memory for tpu_custom_call.1']
  %s0 = inlined_call_operand.<no memory space> [shape: s32[1], index: 0, kind: input, shape index: {}]
  %s1 = inlined_call_operand.hbm [shape: f32[4,128], index: 1, kind: output, shape index: {}]
  %s2 = sld [smem:[#allocation0]]
  $region14: #{tpu_custom_call.1} parent=0
    _
  %s4 = ssub.s32 1, %s2
  %s5 = scalar_select 0, %s4, %s2
  %6 = sst [smem:[#allocation2]] %s0
  $region1: #{tpu_custom_call.1} parent=0
    #allocation3 [shape = 'u8[2048]{0}', space=vmem, size = 0x800, scoped, tag = 'output window, operand 0, single buffered']
    #allocation4 [shape = 's32[1]{0}', space=sflag, size = 0x4, scoped, tag = 'scoped memory for tpu_custom_call.1']
    %7 = vsyncpa [#allocation4], 0
    // Predicated region
    $region2: #{tpu_custom_call.1} parent=1 // pred_check
      _
    $region3: #{tpu_custom_call.1} parent=1 // pred_check_branch
      %9 = sbr.rel (0) target = $region5
    $region4: #{tpu_custom_call.1} parent=1 // pred_region
      _
    $region5: #{tpu_custom_call.1} parent=1 // pred_fallthru
      _
    %s10 = smul.u32 0, 4
    %v11 = vlaneseq
    %v12 = vshrl.u32 %v11, 7
    %v13 = vlaneseq
    %v14 = vand.u32 %v13, 127
    %v15 = vstv %s10
    %v16 = vadd.s32 %v15, %v12
    %v17 = vmul.u32 %v16, 128
    %v18 = vadd.s32 %v17, %v14
    %s19 = sld [smem:[#allocation2]]
    %s20 = smul.u32 %s19, 2654435769
    %v21 = vstv %s20
    %v22 = vadd.s32 %v18, %v21
    %v23 = vshrl.u32 %v22, 16
    %v24 = vxor.u32 %v22, %v23
    %v25 = vmul.u32 %v24, 2246822507
    %v26 = vshrl.u32 %v25, 13
    %v27 = vxor.u32 %v25, %v26
    %v28 = vmul.u32 %v27, 3266489909
    %v29 = vshrl.u32 %v28, 16
    %v30 = vxor.u32 %v28, %v29
    %v31 = vshrl.u32 %v30, 8
    %v32 = vcvt.s32.f32 %v31
    %v33 = vmul.f32 %v32, 5.9604645e-08
    %34 = vst [vmem:[#allocation3] sm:$0xf] %v33
    // Predicated region
    $region6: #{tpu_custom_call.1} parent=1 // pred_check
      _
    $region7: #{tpu_custom_call.1} parent=1 // pred_check_branch
      %36 = sbr.rel (0) target = $region9
    $region8: #{tpu_custom_call.1} parent=1 // pred_region
      %s38 = ssub.s32 64, 64
      %39 = vsyncadd [#allocation4], %s38
      %s41 = sshll.u32 [#allocation3], 4
      %s42 = int_to_ptr.vmem [resolvable:$true] %s41
      %44 = dma.vmem_to_hbm [thread:$0]  %s42, 64, %s1, [#allocation4]
    $region9: #{tpu_custom_call.1} parent=1 // pred_fallthru
      _
    // Predicated region
    $region10: #{tpu_custom_call.1} parent=1 // pred_check
      _
    $region11: #{tpu_custom_call.1} parent=1 // pred_check_branch
      %46 = sbr.rel (0) target = $region13
    $region12: #{tpu_custom_call.1} parent=1 // pred_region
      %47 = dma.done [#allocation4], 64
    $region13: #{tpu_custom_call.1} parent=1 // pred_fallthru
      _
    %48 = vsyncpa [#allocation4], 1

</llo_original>
